<compile_context>
chip_gen: v7x
topology: tpu7x:2x2x1
jax: 0.10.0
libtpu: 0.0.40
codegen_flags: <defaults>
</compile_context>

<pallas_src>
import math

import jax
import jax.numpy as jnp
from jax.experimental import pallas as pl
from jax.experimental.pallas import tpu as pltpu

_SUBLANES = 8     # f32 sublane count
_LANES = 128      # vreg lane width


def _copy_kernel(x_ref, o_ref):
    # Pure pass-through: full-tile load + unmasked lane-dense store.
    o_ref[...] = x_ref[...]


def _pick_lane_width(total: int) -> int:
    # Widest multiple of 128 such that at least one full (8, W) tile of real
    # data exists (avoids gross over-padding for tiny inputs).
    for w in (2048, 1024, 512, 256):
        if total >= _SUBLANES * w:
            return w
    return _LANES


def _vmem_capacity_bytes() -> int:
    try:
        return int(pltpu.get_tpu_info().vmem_capacity_bytes)
    except Exception:
        return 64 << 20   # conservative (v7x-sized) if the query is unavailable


def _round_up(x: int, m: int) -> int:
    return ((x + m - 1) // m) * m


def inception_module_v4_forward(x: jax.Array, *, use_pallas_copy: bool = False) -> jax.Array:
    """Pallas equivalent of InceptionModulev4.forward (identity pass-through).

    Default path is the roofline-optimal `return x` (zero HBM traffic).
    With use_pallas_copy=True the identity is materialized through a
    lane-dense, auto-pipelined Pallas HBM copy (for testing the kernel path).
    """
    if not use_pallas_copy:
        return x

    orig_shape = x.shape
    total = math.prod(orig_shape)
    itemsize = jnp.dtype(x.dtype).itemsize

    # --- lane-dense slab: flatten, pad to a multiple of (8, W), reshape ------
    W = _pick_lane_width(total)
    tile_elems = _SUBLANES * W
    pad_total = _round_up(total, tile_elems)
    rows = pad_total // W                        # multiple of 8 by construction

    xf = x.reshape(-1)
    if pad_total != total:
        xf = jnp.pad(xf, (0, pad_total - total))
    x2 = xf.reshape(rows, W)

    # --- generation-aware block sizing ---------------------------------------
    vmem_cap = _vmem_capacity_bytes()
    # ~8 MiB blocks on 128 MiB-VMEM chips (v5e/v6e), ~4 MiB on v7x (64 MiB/TC).
    target_block_bytes = (8 << 20) if vmem_cap > (96 << 20) else (4 << 20)
    block_rows = max(
        _SUBLANES,
        (target_block_bytes // (W * itemsize)) // _SUBLANES * _SUBLANES,
    )
    block_rows = min(block_rows, rows)
    # Keep at least 2 grid steps when possible so ("parallel",) actually feeds
    # both TensorCores on v7x.
    if block_rows == rows and rows >= 2 * _SUBLANES:
        block_rows = _round_up(pl.cdiv(rows, 2), _SUBLANES)

    grid = (pl.cdiv(rows, block_rows),)
    block_bytes = block_rows * W * itemsize
    # in + out, double-buffered, plus slack; capped at 48 MiB (safe on v7x).
    vmem_limit = min(max(4 * block_bytes + (2 << 20), 16 << 20), 48 << 20)

    cost = pl.CostEstimate(flops=0, transcendentals=0,
                           bytes_accessed=2 * pad_total * itemsize)

    out2 = pl.pallas_call(
        _copy_kernel,
        out_shape=jax.ShapeDtypeStruct((rows, W), x.dtype),
        grid_spec=pltpu.PrefetchScalarGridSpec(
            num_scalar_prefetch=0,
            grid=grid,
            in_specs=[pl.BlockSpec((block_rows, W), lambda i: (i, 0))],
            out_specs=pl.BlockSpec((block_rows, W), lambda i: (i, 0)),
        ),
        compiler_params=pltpu.CompilerParams(
            dimension_semantics=("parallel",),   # shard grid steps across TCs
            vmem_limit_bytes=vmem_limit,
        ),
        cost_estimate=cost,
    )(x2)

    out_flat = out2.reshape(-1)
    if pad_total != total:
        out_flat = out_flat[:total]
    return out_flat.reshape(orig_shape)


if __name__ == "__main__":
    key = jax.random.PRNGKey(0)

    # Small NCHW input consistent with a GoogLeNet-style module.
    x = jax.random.normal(key, (2, 4, 16, 16), dtype=jnp.float32)
    x_host = jax.device_get(x)

    # 1) Default (short-circuit) path.
    out_fast = inception_module_v4_forward(x)
    jax.block_until_ready(out_fast)
    assert out_fast.shape == x_host.shape and out_fast.dtype == x.dtype
    assert bool(jnp.array_equal(out_fast, jnp.asarray(x_host)))

    # 2) Pallas copy path (exercises the kernel).
    out = inception_module_v4_forward(x, use_pallas_copy=True)
    jax.block_until_ready(out)
    assert out.shape == x_host.shape and out.dtype == x.dtype
    assert bool(jnp.array_equal(out, jnp.asarray(x_host)))

    # 3) Odd-sized shape to exercise the pad-and-slice path (previous fallback).
    y = jax.random.normal(jax.random.PRNGKey(1), (3, 5, 7), dtype=jnp.float32)
    y_host = jax.device_get(y)
    out_y = inception_module_v4_forward(y, use_pallas_copy=True)
    jax.block_until_ready(out_y)
    assert out_y.shape == y_host.shape and out_y.dtype == y.dtype
    assert bool(jnp.array_equal(out_y, jnp.asarray(y_host)))

    print("KERNEL_OK")
</pallas_src>

<mosaic_0001>
module attributes {stable_mosaic.version = 11 : i64} {
  func.func @_copy_kernel(%arg0: i32, %arg1: memref<8x256xf32, #tpu.memory_space<vmem>>, %arg2: memref<8x256xf32, #tpu.memory_space<vmem>>) attributes {dimension_semantics = [#tpu.dimension_semantics<parallel>], iteration_bounds = array<i64: 1>, scalar_prefetch = 0 : i64, scratch_operands = 0 : i64, tpu.core_type = #tpu.core_type<tc>, window_params = [{transform_indices = @transform_0, window_bounds = array<i64: 8, 256>}, {transform_indices = @transform_1, window_bounds = array<i64: 8, 256>}]} {
    %c0 = arith.constant 0 : index
    %c0_0 = arith.constant 0 : index
    %0 = vector.load %arg1[%c0, %c0_0] : memref<8x256xf32, #tpu.memory_space<vmem>>, vector<8x256xf32>
    %c0_1 = arith.constant 0 : index
    %c0_2 = arith.constant 0 : index
    %1 = vector.load %arg2[%c0_1, %c0_2] : memref<8x256xf32, #tpu.memory_space<vmem>>, vector<8x256xf32>
    tpu.vector_store %arg2[%c0_1, %c0_2], %0 {strides = array<i32>} : memref<8x256xf32, #tpu.memory_space<vmem>>, vector<8x256xf32>,
    return
  }
  func.func @transform_0(%arg0: i32) -> (i32, i32) {
    %c0_i32 = arith.constant 0 : i32
    %c0_i32_0 = arith.constant 0 : i32
    return %arg0, %c0_i32 : i32, i32
  }
  func.func @transform_1(%arg0: i32) -> (i32, i32) {
    %c0_i32 = arith.constant 0 : i32
    %c0_i32_0 = arith.constant 0 : i32
    return %arg0, %c0_i32 : i32, i32
  }
}

</mosaic_0001>

<llo_original>
// kernel: tpu_custom_call.1
$region0: #{tpu_custom_call.1}
  #allocation0 [shape = 'u32[]', space=smem, size = 0x4, offset = 0x4, fixed_abs, tag = 'smem constant byte address 0x4 - core index']
  #allocation1 [shape = 'u32[144,128]{1,0:T(1,128)}', space=vmem, size = 0x12000, scoped, tag = 'internal scratch']
  %s0 = inlined_call_operand.hbm [shape: f32[8,256], index: 0, kind: input, shape index: {}]
  %s1 = inlined_call_operand.hbm [shape: f32[8,256], index: 1, kind: output, shape index: {}]
  %s2 = sld [smem:[#allocation0]]
  $region18: #{tpu_custom_call.1} parent=0
    _
  %s4 = ssub.s32 1, %s2
  %s5 = scalar_select 0, %s4, %s2
  $region1: #{tpu_custom_call.1} parent=0
    #allocation2 [shape = 'u8[8192]{0}', space=vmem, size = 0x2000, scoped, tag = 'input window, operand 0, single buffered']
    #allocation3 [shape = 's32[1]{0}', space=sflag, size = 0x4, scoped, tag = 'scoped memory for tpu_custom_call.1']
    #allocation4 [shape = 's32[1]{0}', space=sflag, size = 0x4, scoped, tag = 'scoped memory for tpu_custom_call.1']
    #allocation5 [shape = 'u8[8192]{0}', space=vmem, size = 0x2000, scoped, tag = 'output window, operand 0, single buffered']
    %6 = vsyncpa [#allocation3], 0
    %7 = vsyncpa [#allocation4], 0
    // Predicated region
    $region2: #{tpu_custom_call.1} parent=1 // pred_check
      _
    $region3: #{tpu_custom_call.1} parent=1 // pred_check_branch
      %9 = sbr.rel (0) target = $region5
    $region4: #{tpu_custom_call.1} parent=1 // pred_region
      %s11 = ssub.s32 256, 256
      %12 = vsyncadd [#allocation3], %s11
      %s14 = sshll.u32 [#allocation2], 4
      %s15 = int_to_ptr.vmem [resolvable:$true] %s14
      %17 = dma.hbm_to_vmem [thread:$0]  %s0, 256, %s15, [#allocation3]
    $region5: #{tpu_custom_call.1} parent=1 // pred_fallthru
      _
    // Predicated region
    $region6: #{tpu_custom_call.1} parent=1 // pred_check
      _
    $region7: #{tpu_custom_call.1} parent=1 // pred_check_branch
      %19 = sbr.rel (0) target = $region9
    $region8: #{tpu_custom_call.1} parent=1 // pred_region
      %20 = dma.done [#allocation3], 256
    $region9: #{tpu_custom_call.1} parent=1 // pred_fallthru
      _
    %v21 = vld [vmem:[#allocation2] sm:$0xff]
    %v22 = vld [vmem:[#allocation2 + $0x8] sm:$0xff]
    %23 = vst [vmem:[#allocation5] sm:$0xff] %v21
    %24 = vst [vmem:[#allocation5 + $0x8] sm:$0xff] %v22
    // Predicated region
    $region10: #{tpu_custom_call.1} parent=1 // pred_check
      _
    $region11: #{tpu_custom_call.1} parent=1 // pred_check_branch
      %26 = sbr.rel (0) target = $region13
    $region12: #{tpu_custom_call.1} parent=1 // pred_region
      %s28 = ssub.s32 256, 256
      %29 = vsyncadd [#allocation4], %s28
      %s31 = sshll.u32 [#allocation5], 4
      %s32 = int_to_ptr.vmem [resolvable:$true] %s31
      %34 = dma.vmem_to_hbm [thread:$0]  %s32, 256, %s1, [#allocation4]
    $region13: #{tpu_custom_call.1} parent=1 // pred_fallthru
      _
    // Predicated region
    $region14: #{tpu_custom_call.1} parent=1 // pred_check
      _
    $region15: #{tpu_custom_call.1} parent=1 // pred_check_branch
      %36 = sbr.rel (0) target = $region17
    $region16: #{tpu_custom_call.1} parent=1 // pred_region
      %37 = dma.done [#allocation4], 256
    $region17: #{tpu_custom_call.1} parent=1 // pred_fallthru
      _
    %38 = vsyncpa [#allocation3], 1
    %39 = vsyncpa [#allocation4], 1

</llo_original>
